<compile_context>
chip_gen: v5e
topology: v5e:2x2
jax: 0.10.0
libtpu: 0.0.40
codegen_flags: <defaults>
</compile_context>

<pallas_src>
import functools

import jax
import jax.numpy as jnp
from jax.experimental import pallas as pl
from jax.experimental.pallas import tpu as pltpu

LANE = 128


def _round_up(x, m):
    return (x + m - 1) // m * m


def _pick_batch_tile(b, s, e, total_cols, out_cols, budget_bytes=24 * 1024 * 1024):
    """Largest batch tile (multiple of 8, dividing b) whose working set fits a
    conservative VMEM budget (double-buffered bf16 x / f32 out blocks + the
    f32 matmul result and its shifted-slice intermediates). Sized to also fit
    v7x's smaller VMEM."""
    candidates = [t for t in (256, 128, 64, 32, 16, 8) if b % t == 0]
    for tb in candidates:
        x_bytes = 2 * (tb * s * e * 2)            # bf16 input block, double buffered
        z_bytes = 2 * (tb * s * total_cols * 4)   # f32 matmul result + slice headroom
        o_bytes = 2 * (tb * out_cols * 4)         # f32 output block, double buffered
        if x_bytes + z_bytes + o_bytes <= budget_bytes:
            return tb
    return candidates[-1] if candidates else b


def _cnn_kernel(x_ref, w_ref, b_ref, o_ref, *, kernel_sizes, fp):
    """Fused text-CNN block for a tile of the batch.

    x_ref: (TB, S, E)        bf16 embeddings (full sequence, batch tile)
    w_ref: (E, C)            bf16 packed conv weights, C = sum(k_i) * fp,
                             columns ordered [k0: dt=0..k0-1][k1: ...], each
                             dt chunk is fp filter columns (zero-padded).
    b_ref: (1, NK*fp)        f32 conv biases (zero-padded), NK = len(kernel_sizes)
    o_ref: (TB, NK*fp)       f32 max-pooled features (lane-dense stores)
    """
    TB, S, E = x_ref.shape

    # One big flat matmul: M = TB*S keeps the MXU full, N = C is lane-dense.
    x_flat = x_ref[...].reshape(TB * S, E)                        # bf16 (TB*S, E)
    z = jnp.dot(x_flat, w_ref[...],
                preferred_element_type=jnp.float32)               # f32 (TB*S, C)
    z = z.reshape(TB, S, -1)                                      # (TB, S, C)

    col = 0
    off = 0
    for k in kernel_sizes:                                        # static unroll (2, 3, ...)
        L = S - k + 1
        s = None
        for dt in range(k):
            zs = z[:, dt:dt + L, col:col + fp]                    # shifted slice (TB, L, fp)
            s = zs if s is None else s + zs                       # conv pre-activation
            col += fp
        m = jnp.max(s, axis=1)                                    # max-pool over time (TB, fp)
        # Bias + ReLU hoisted past the max (exact: bias t-invariant, relu monotone).
        o_ref[:, off:off + fp] = jnp.maximum(m + b_ref[:, off:off + fp], 0.0)
        off += fp


def _cnn_pallas(x_bf16, w_packed, bias_packed, kernel_sizes, fp):
    B, S, E = x_bf16.shape
    C = w_packed.shape[-1]
    out_cols = len(kernel_sizes) * fp
    TB = _pick_batch_tile(B, S, E, C, out_cols)

    kern = functools.partial(_cnn_kernel, kernel_sizes=tuple(kernel_sizes), fp=fp)
    return pl.pallas_call(
        kern,
        out_shape=jax.ShapeDtypeStruct((B, out_cols), jnp.float32),
        grid_spec=pltpu.PrefetchScalarGridSpec(
            num_scalar_prefetch=0,
            grid=(B // TB,),
            in_specs=[
                pl.BlockSpec((TB, S, E), lambda i: (i, 0, 0)),     # batch-tiled x
                pl.BlockSpec((E, C), lambda i: (0, 0)),            # packed weights resident
                pl.BlockSpec((1, out_cols), lambda i: (0, 0)),     # packed bias resident
            ],
            out_specs=pl.BlockSpec((TB, out_cols), lambda i: (i, 0)),
        ),
        compiler_params=pltpu.CompilerParams(
            dimension_semantics=("parallel",)),                    # v7x: split over 2 TCs
    )(x_bf16, w_packed, bias_packed)


class CNNFeatureExtractPallas:
    def __init__(self, embedding_dim, filter_num, kernel_sizes=(2, 3), key=None):
        self.embedding_dim = embedding_dim
        self.filter_num = filter_num
        self.kernel_sizes = tuple(kernel_sizes)
        if key is None:
            key = jax.random.PRNGKey(0)
        self.weights = []   # list of (F, 1, k, E) like nn.Conv2d weight
        self.biases = []    # list of (F,)
        for k in self.kernel_sizes:
            key, wk, bk = jax.random.split(key, 3)
            fan_in = 1 * k * embedding_dim
            bound = 1.0 / jnp.sqrt(fan_in)
            w = jax.random.uniform(
                wk, (filter_num, 1, k, embedding_dim),
                minval=-bound, maxval=bound, dtype=jnp.float32)
            b = jax.random.uniform(
                bk, (filter_num,), minval=-bound, maxval=bound, dtype=jnp.float32)
            self.weights.append(w)
            self.biases.append(b)

    def _pack_params(self, fp):
        """Pack all conv weights into one (E, C) bf16 matrix and all biases
        into one (1, NK*fp) f32 row (columns per kernel size zero-padded)."""
        w_cols = []
        b_cols = []
        for k, w, b in zip(self.kernel_sizes, self.weights, self.biases):
            wt = jnp.transpose(w[:, 0, :, :], (1, 2, 0))               # (k, E, F)
            wt = jnp.pad(wt, ((0, 0), (0, 0), (0, fp - self.filter_num)))
            wt = jnp.transpose(wt, (1, 0, 2)).reshape(self.embedding_dim, k * fp)
            w_cols.append(wt)
            b_cols.append(jnp.pad(b, (0, fp - self.filter_num)))
        w_packed = jnp.concatenate(w_cols, axis=1).astype(jnp.bfloat16)  # (E, C)
        b_packed = jnp.concatenate(b_cols).reshape(1, -1).astype(jnp.float32)
        return w_packed, b_packed

    def __call__(self, embedding_feature):
        # embedding_feature: (B, S, E) float32
        x_bf16 = embedding_feature.astype(jnp.bfloat16)     # bf16 MXU operands
        fp = _round_up(self.filter_num, LANE)                # lane-dense filter axis
        w_packed, b_packed = self._pack_params(fp)
        out = _cnn_pallas(x_bf16, w_packed, b_packed, self.kernel_sizes, fp)
        # Drop zero-padded filter columns and restore PyTorch concat order.
        pieces = [out[:, i * fp: i * fp + self.filter_num]
                  for i in range(len(self.kernel_sizes))]
        # TODO(synk): nn.Dropout is identity at inference time; not applied here.
        return jnp.concatenate(pieces, axis=1)               # (B, F * len(kernel_sizes))


def _reference(x, model):
    """Plain-JAX reference mirroring the original op order (conv+bias, relu,
    then max) with the same bf16 matmul operands / f32 accumulation."""
    B, S, E = x.shape
    xb = x.astype(jnp.bfloat16)
    outs = []
    for k, w, b in zip(model.kernel_sizes, model.weights, model.biases):
        wb = w[:, 0, :, :].astype(jnp.bfloat16)          # (F, k, E)
        L = S - k + 1
        conv = jnp.stack(
            [jnp.einsum("bde,fde->bf", xb[:, t:t + k, :], wb,
                        preferred_element_type=jnp.float32) + b
             for t in range(L)], axis=2)                 # (B, F, L)
        conv = jnp.maximum(conv, 0.0)                    # relu BEFORE max (original order)
        outs.append(jnp.max(conv, axis=2))               # (B, F)
    return jnp.concatenate(outs, axis=1)


if __name__ == "__main__":
    key = jax.random.PRNGKey(0)
    kx, kp = jax.random.split(key)

    B, S, E = 2, 8, 32
    filter_num = 16
    kernel_sizes = (2, 3)

    x = jax.random.normal(kx, (B, S, E), dtype=jnp.float32)
    model = CNNFeatureExtractPallas(E, filter_num, kernel_sizes, key=kp)

    out = jax.block_until_ready(model(x))
    ref = _reference(x, model)

    assert out.shape == (B, filter_num * len(kernel_sizes)), out.shape
    assert jnp.allclose(out, ref, atol=1e-3, rtol=1e-3), \
        f"max err {jnp.max(jnp.abs(out - ref))}"

    print("KERNEL_OK")
</pallas_src>

<mosaic_0001>
module attributes {stable_mosaic.version = 11 : i64} {
  func.func @_cnn_kernel(%arg0: i32, %arg1: memref<2x8x32xbf16, #tpu.memory_space<vmem>>, %arg2: memref<32x640xbf16, #tpu.memory_space<vmem>>, %arg3: memref<1x256xf32, #tpu.memory_space<vmem>>, %arg4: memref<2x256xf32, #tpu.memory_space<vmem>>) attributes {dimension_semantics = [#tpu.dimension_semantics<parallel>], iteration_bounds = array<i64: 1>, scalar_prefetch = 0 : i64, scratch_operands = 0 : i64, tpu.core_type = #tpu.core_type<tc>, window_params = [{transform_indices = @transform_0, window_bounds = array<i64: 2, 8, 32>}, {pipeline_mode = #tpu.pipeline_mode<synchronous>, transform_indices = @transform_1, window_bounds = array<i64: 32, 640>}, {pipeline_mode = #tpu.pipeline_mode<synchronous>, transform_indices = @transform_2, window_bounds = array<i64: 1, 256>}, {transform_indices = @transform_3, window_bounds = array<i64: 2, 256>}]} {
    %c0 = arith.constant 0 : index
    %c0_0 = arith.constant 0 : index
    %c0_1 = arith.constant 0 : index
    %0 = vector.load %arg1[%c0, %c0_0, %c0_1] : memref<2x8x32xbf16, #tpu.memory_space<vmem>>, vector<2x8x32xbf16>
    %1 = vector.shape_cast %0 : vector<2x8x32xbf16> to vector<16x32xbf16>
    %c0_2 = arith.constant 0 : index
    %c0_3 = arith.constant 0 : index
    %2 = vector.load %arg2[%c0_2, %c0_3] : memref<32x640xbf16, #tpu.memory_space<vmem>>, vector<32x640xbf16>
    %cst = arith.constant dense<0.000000e+00> : vector<16x640xf32>
    %3 = tpu.matmul %1, %2, %cst {dimension_numbers = #tpu.dot_dimension_numbers<[1], [0], [0], [1], [0, 0, 1, 1], [], []>} : vector<16x32xbf16>, vector<32x640xbf16>, vector<16x640xf32> -> vector<16x640xf32>
    %4 = vector.shape_cast %3 : vector<16x640xf32> to vector<2x8x640xf32>
    %5 = vector.extract_strided_slice %4 {offsets = [0, 0, 0], sizes = [2, 7, 128], strides = [1, 1, 1]} : vector<2x8x640xf32> to vector<2x7x128xf32>
    %6 = vector.extract_strided_slice %4 {offsets = [0, 1, 128], sizes = [2, 7, 128], strides = [1, 1, 1]} : vector<2x8x640xf32> to vector<2x7x128xf32>
    %7 = arith.addf %5, %6 : vector<2x7x128xf32>
    %cst_4 = arith.constant dense<0xFF800000> : vector<2x128xf32>
    %8 = vector.multi_reduction <maximumf>, %7, %cst_4 [1] : vector<2x7x128xf32> to vector<2x128xf32>
    %c0_5 = arith.constant 0 : index
    %c0_6 = arith.constant 0 : index
    %9 = vector.load %arg3[%c0_5, %c0_6] : memref<1x256xf32, #tpu.memory_space<vmem>>, vector<1x128xf32>
    %10 = vector.broadcast %9 : vector<1x128xf32> to vector<2x128xf32>
    %11 = arith.addf %8, %10 : vector<2x128xf32>
    %cst_7 = arith.constant 0.000000e+00 : f32
    %12 = vector.broadcast %cst_7 : f32 to vector<2x128xf32>
    %13 = arith.maximumf %11, %12 : vector<2x128xf32>
    %c0_8 = arith.constant 0 : index
    %c0_9 = arith.constant 0 : index
    %14 = vector.load %arg4[%c0_8, %c0_9] : memref<2x256xf32, #tpu.memory_space<vmem>>, vector<2x128xf32>
    tpu.vector_store %arg4[%c0_8, %c0_9], %13 {strides = array<i32>} : memref<2x256xf32, #tpu.memory_space<vmem>>, vector<2x128xf32>,
    %15 = vector.extract_strided_slice %4 {offsets = [0, 0, 256], sizes = [2, 6, 128], strides = [1, 1, 1]} : vector<2x8x640xf32> to vector<2x6x128xf32>
    %16 = vector.extract_strided_slice %4 {offsets = [0, 1, 384], sizes = [2, 6, 128], strides = [1, 1, 1]} : vector<2x8x640xf32> to vector<2x6x128xf32>
    %17 = arith.addf %15, %16 : vector<2x6x128xf32>
    %18 = vector.extract_strided_slice %4 {offsets = [0, 2, 512], sizes = [2, 6, 128], strides = [1, 1, 1]} : vector<2x8x640xf32> to vector<2x6x128xf32>
    %19 = arith.addf %17, %18 : vector<2x6x128xf32>
    %cst_10 = arith.constant dense<0xFF800000> : vector<2x128xf32>
    %20 = vector.multi_reduction <maximumf>, %19, %cst_10 [1] : vector<2x6x128xf32> to vector<2x128xf32>
    %c0_11 = arith.constant 0 : index
    %c128 = arith.constant 128 : index
    %21 = vector.load %arg3[%c0_11, %c128] : memref<1x256xf32, #tpu.memory_space<vmem>>, vector<1x128xf32>
    %22 = vector.broadcast %21 : vector<1x128xf32> to vector<2x128xf32>
    %23 = arith.addf %20, %22 : vector<2x128xf32>
    %cst_12 = arith.constant 0.000000e+00 : f32
    %24 = vector.broadcast %cst_12 : f32 to vector<2x128xf32>
    %25 = arith.maximumf %23, %24 : vector<2x128xf32>
    %c0_13 = arith.constant 0 : index
    %c128_14 = arith.constant 128 : index
    %26 = vector.load %arg4[%c0_13, %c128_14] : memref<2x256xf32, #tpu.memory_space<vmem>>, vector<2x128xf32>
    tpu.vector_store %arg4[%c0_13, %c128_14], %25 {strides = array<i32>} : memref<2x256xf32, #tpu.memory_space<vmem>>, vector<2x128xf32>,
    return
  }
  func.func @transform_0(%arg0: i32) -> (i32, i32, i32) {
    %c0_i32 = arith.constant 0 : i32
    %c0_i32_0 = arith.constant 0 : i32
    %c0_i32_1 = arith.constant 0 : i32
    return %arg0, %c0_i32, %c0_i32_0 : i32, i32, i32
  }
  func.func @transform_1(%arg0: i32) -> (i32, i32) {
    %c0_i32 = arith.constant 0 : i32
    %c0_i32_0 = arith.constant 0 : i32
    %c0_i32_1 = arith.constant 0 : i32
    return %c0_i32, %c0_i32_0 : i32, i32
  }
  func.func @transform_2(%arg0: i32) -> (i32, i32) {
    %c0_i32 = arith.constant 0 : i32
    %c0_i32_0 = arith.constant 0 : i32
    %c0_i32_1 = arith.constant 0 : i32
    return %c0_i32, %c0_i32_0 : i32, i32
  }
  func.func @transform_3(%arg0: i32) -> (i32, i32) {
    %c0_i32 = arith.constant 0 : i32
    %c0_i32_0 = arith.constant 0 : i32
    return %arg0, %c0_i32 : i32, i32
  }
}

</mosaic_0001>

<llo_original>
// kernel: tpu_custom_call.1
$region0: #{tpu_custom_call.1}
  #allocation0 [shape = 'u32[]', space=smem, size = 0x4, offset = 0x4, fixed_abs, tag = 'smem constant byte address 0x4 - core index']
  #allocation1 [shape = 'u32[72,128]{1,0:T(1,128)}', space=vmem, size = 0x9000, scoped, tag = 'internal scratch']
  %s0 = inlined_call_operand.hbm [shape: bf16[2,8,32], index: 0, kind: input, shape index: {}]
  %s1 = inlined_call_operand.hbm [shape: bf16[32,640], index: 1, kind: input, shape index: {}]
  %s2 = inlined_call_operand.hbm [shape: f32[1,256], index: 2, kind: input, shape index: {}]
  %s3 = inlined_call_operand.hbm [shape: f32[2,256], index: 3, kind: output, shape index: {}]
  %s4 = sld [smem:[#allocation0]]
  $region34: #{tpu_custom_call.1} parent=0
    _
  %s6 = ssub.s32 1, %s4
  %s7 = scalar_select 0, %s6, %s4
  $region1: #{tpu_custom_call.1} parent=0
    #allocation2 [shape = 'u8[4096]{0}', space=vmem, size = 0x1000, scoped, tag = 'input window, operand 0, single buffered']
    #allocation3 [shape = 's32[1]{0}', space=sflag, size = 0x4, scoped, tag = 'scoped memory for tpu_custom_call.1']
    #allocation4 [shape = 's32[1]{0}', space=sflag, size = 0x4, scoped, tag = 'scoped memory for tpu_custom_call.1']
    #allocation5 [shape = 'u8[40960]{0}', space=vmem, size = 0xa000, scoped, tag = 'input window, operand 1, single buffered']
    #allocation6 [shape = 's32[1]{0}', space=sflag, size = 0x4, scoped, tag = 'scoped memory for tpu_custom_call.1']
    #allocation7 [shape = 'u8[1024]{0}', space=vmem, size = 0x400, scoped, tag = 'input window, operand 2, single buffered']
    #allocation8 [shape = 'u8[2048]{0}', space=vmem, size = 0x800, scoped, tag = 'output window, operand 0, single buffered']
    %8 = vsyncpa [#allocation3], 0
    %9 = vsyncpa [#allocation6], 0
    %10 = vsyncpa [#allocation4], 0
    // Predicated region
    $region2: #{tpu_custom_call.1} parent=1 // pred_check
      _
    $region3: #{tpu_custom_call.1} parent=1 // pred_check_branch
      %12 = sbr.rel (0) target = $region5
    $region4: #{tpu_custom_call.1} parent=1 // pred_region
      %14 = vsyncadd [#allocation3], 0
      %s15 = sshll.u32 %s0, 4
      %s16 = int_to_ptr.hbm [resolvable:$true] %s15
      %s17 = sshll.u32 [#allocation2], 4
      %s18 = int_to_ptr.vmem [resolvable:$true] %s17
      %23 = dma.hbm_to_vmem [thread:$0]  %s16, 128, %s18, [#allocation3], 64, 64, 4
    $region5: #{tpu_custom_call.1} parent=1 // pred_fallthru
      _
    // Predicated region
    $region6: #{tpu_custom_call.1} parent=1 // pred_check
      _
    $region7: #{tpu_custom_call.1} parent=1 // pred_check_branch
      %25 = sbr.rel (0) target = $region9
    $region8: #{tpu_custom_call.1} parent=1 // pred_region
      %27 = vsyncadd [#allocation6], 0
      %s28 = sshll.u32 %s1, 4
      %s29 = int_to_ptr.hbm [resolvable:$true] %s28
      %s30 = sshll.u32 [#allocation5], 4
      %s31 = int_to_ptr.vmem [resolvable:$true] %s30
      %36 = dma.hbm_to_vmem [thread:$0]  %s29, 1280, %s31, [#allocation6], 320, 320, 20
    $region9: #{tpu_custom_call.1} parent=1 // pred_fallthru
      _
    // Predicated region
    $region10: #{tpu_custom_call.1} parent=1 // pred_check
      _
    $region11: #{tpu_custom_call.1} parent=1 // pred_check_branch
      %38 = sbr.rel (0) target = $region13
    $region12: #{tpu_custom_call.1} parent=1 // pred_region
      %40 = vsyncadd [#allocation6], 0
      %s42 = sshll.u32 %s2, 4
      %s43 = int_to_ptr.hbm [resolvable:$true] %s42
      %s44 = sshll.u32 [#allocation7], 4
      %s45 = int_to_ptr.vmem [resolvable:$true] %s44
      %47 = dma.hbm_to_vmem [thread:$0]  %s43, 32, %s45, [#allocation6]
    $region13: #{tpu_custom_call.1} parent=1 // pred_fallthru
      _
    // Predicated region
    $region14: #{tpu_custom_call.1} parent=1 // pred_check
      _
    $region15: #{tpu_custom_call.1} parent=1 // pred_check_branch
      %49 = sbr.rel (0) target = $region17
    $region16: #{tpu_custom_call.1} parent=1 // pred_region
      %51 = dma.done [#allocation3], 128
    $region17: #{tpu_custom_call.1} parent=1 // pred_fallthru
      _
    // Predicated region
    $region18: #{tpu_custom_call.1} parent=1 // pred_check
      _
    $region19: #{tpu_custom_call.1} parent=1 // pred_check_branch
      %53 = sbr.rel (0) target = $region21
    $region20: #{tpu_custom_call.1} parent=1 // pred_region
      %55 = dma.done [#allocation6], 1280
    $region21: #{tpu_custom_call.1} parent=1 // pred_fallthru
      _
    // Predicated region
    $region22: #{tpu_custom_call.1} parent=1 // pred_check
      _
    $region23: #{tpu_custom_call.1} parent=1 // pred_check_branch
      %57 = sbr.rel (0) target = $region25
    $region24: #{tpu_custom_call.1} parent=1 // pred_region
      %59 = dma.done [#allocation6], 32
    $region25: #{tpu_custom_call.1} parent=1 // pred_fallthru
      _
    %v61 = vld [vmem:[#allocation2] sm:$0xf]
    %v62 = vld [vmem:[#allocation2 + $0x4] sm:$0xf]
    %v63 = vld [vmem:[#allocation5] sm:$0xff]
    %v64 = vld [vmem:[#allocation5 + $0x8] sm:$0xff]
    %v65 = vld [vmem:[#allocation5 + $0x10] sm:$0xf]
    %v66 = vld [vmem:[#allocation5 + $0x14] sm:$0xff]
    %v67 = vld [vmem:[#allocation5 + $0x1c] sm:$0xff]
    %v68 = vld [vmem:[#allocation5 + $0x24] sm:$0xf]
    %v69 = vld [vmem:[#allocation5 + $0x28] sm:$0xff]
    %v70 = vld [vmem:[#allocation5 + $0x30] sm:$0xff]
    %v71 = vld [vmem:[#allocation5 + $0x38] sm:$0xf]
    %v72 = vld [vmem:[#allocation5 + $0x3c] sm:$0xff]
    %v73 = vld [vmem:[#allocation5 + $0x44] sm:$0xff]
    %v74 = vld [vmem:[#allocation5 + $0x4c] sm:$0xf]
    %v77 = vunpack.c.l.b16 %v61
    %v78 = vunpack.c.l.b16 %v62
    %v79 = vpack.c.b16 %v78, %v77
    %v92 = vunpack.c.l.b16 %v63
    %v93 = vunpack.c.h.b16 %v63
    %v94 = vunpack.c.l.b16 %v64
    %v95 = vunpack.c.h.b16 %v64
    %v96 = vunpack.c.l.b16 %v65
    %v97 = vunpack.c.l.b16 %v66
    %v98 = vunpack.c.h.b16 %v66
    %v99 = vunpack.c.l.b16 %v67
    %v100 = vunpack.c.h.b16 %v67
    %v101 = vunpack.c.l.b16 %v68
    %v102 = vunpack.c.l.b16 %v69
    %v103 = vunpack.c.h.b16 %v69
    %v104 = vunpack.c.l.b16 %v70
    %v105 = vunpack.c.h.b16 %v70
    %v106 = vunpack.c.l.b16 %v71
    %v107 = vunpack.c.l.b16 %v72
    %v108 = vunpack.c.h.b16 %v72
    %v109 = vunpack.c.l.b16 %v73
    %v110 = vunpack.c.h.b16 %v73
    %v111 = vunpack.c.l.b16 %v74
    %v112 = vpack.c.b16 %v97, %v92
    %v113 = vpack.c.b16 %v98, %v93
    %v114 = vpack.c.b16 %v99, %v94
    %v115 = vpack.c.b16 %v100, %v95
    %v116 = vpack.c.b16 %v101, %v96
    %v117 = vpack.c.b16 %v107, %v102
    %v118 = vpack.c.b16 %v108, %v103
    %v119 = vpack.c.b16 %v109, %v104
    %v120 = vpack.c.b16 %v110, %v105
    %v121 = vpack.c.b16 %v111, %v106
    %vm132 = vcmask 261120
    %v134 = vsel %vm132, %v79, 0
    %136 = vmatpush.bf16.msra.mxu0 0
    %137 = vmatpush.bf16.msra.mxu0 0
    %138 = vmatpush.bf16.msra.mxu0 0
    %139 = vmatpush.bf16.msra.mxu0 0
    %140 = vmatpush.bf16.msra.mxu0 0
    %141 = vmatpush.bf16.msra.mxu0 0
    %142 = vmatpush.bf16.msra.mxu0 %v117
    %143 = vmatpush.bf16.msra.mxu0 %v112
    %144 = vmatmul.bf16.gmra.mxu0 %v134
    %v145 = vpop.f32.mrf.mxu0
    %v146 = vadd.f32 0.0, %v145
    %v147 = vpop.f32.mrf.mxu0
    %v148 = vadd.f32 0.0, %v147
    %149 = vdwg.mxu0
    %150 = vmatpush.bf16.msra.mxu0 0
    %151 = vmatpush.bf16.msra.mxu0 0
    %152 = vmatpush.bf16.msra.mxu0 0
    %153 = vmatpush.bf16.msra.mxu0 0
    %154 = vmatpush.bf16.msra.mxu0 0
    %155 = vmatpush.bf16.msra.mxu0 0
    %156 = vmatpush.bf16.msra.mxu0 %v118
    %157 = vmatpush.bf16.msra.mxu0 %v113
    %158 = vmatmul.bf16.gmra.mxu0 %v134
    %v159 = vpop.f32.mrf.mxu0
    %v160 = vadd.f32 0.0, %v159
    %v161 = vpop.f32.mrf.mxu0
    %v162 = vadd.f32 0.0, %v161
    %163 = vdwg.mxu0
    %164 = vmatpush.bf16.msra.mxu0 0
    %165 = vmatpush.bf16.msra.mxu0 0
    %166 = vmatpush.bf16.msra.mxu0 0
    %167 = vmatpush.bf16.msra.mxu0 0
    %168 = vmatpush.bf16.msra.mxu0 0
    %169 = vmatpush.bf16.msra.mxu0 0
    %170 = vmatpush.bf16.msra.mxu0 %v119
    %171 = vmatpush.bf16.msra.mxu0 %v114
    %172 = vmatmul.bf16.gmra.mxu0 %v134
    %v173 = vpop.f32.mrf.mxu0
    %v174 = vadd.f32 0.0, %v173
    %v175 = vpop.f32.mrf.mxu0
    %v176 = vadd.f32 0.0, %v175
    %177 = vdwg.mxu0
    %178 = vmatpush.bf16.msra.mxu0 0
    %179 = vmatpush.bf16.msra.mxu0 0
    %180 = vmatpush.bf16.msra.mxu0 0
    %181 = vmatpush.bf16.msra.mxu0 0
    %182 = vmatpush.bf16.msra.mxu0 0
    %183 = vmatpush.bf16.msra.mxu0 0
    %184 = vmatpush.bf16.msra.mxu0 %v120
    %185 = vmatpush.bf16.msra.mxu0 %v115
    %186 = vmatmul.bf16.gmra.mxu0 %v134
    %v187 = vpop.f32.mrf.mxu0
    %v188 = vadd.f32 0.0, %v187
    %v189 = vpop.f32.mrf.mxu0
    %v190 = vadd.f32 0.0, %v189
    %191 = vdwg.mxu0
    %192 = vmatpush.bf16.msra.mxu0 0
    %193 = vmatpush.bf16.msra.mxu0 0
    %194 = vmatpush.bf16.msra.mxu0 0
    %195 = vmatpush.bf16.msra.mxu0 0
    %196 = vmatpush.bf16.msra.mxu0 0
    %197 = vmatpush.bf16.msra.mxu0 0
    %198 = vmatpush.bf16.msra.mxu0 %v121
    %199 = vmatpush.bf16.msra.mxu0 %v116
    %200 = vmatmul.bf16.gmra.mxu0 %v134
    %v201 = vpop.f32.mrf.mxu0
    %v202 = vadd.f32 0.0, %v201
    %v203 = vpop.f32.mrf.mxu0
    %v204 = vadd.f32 0.0, %v203
    %205 = vdwg.mxu0
    %v208 = vrot.slane %v160, 1
    %v209 = vrot.slane %v162, 1
    %v212 = vadd.f32 %v146, %v208
    %v213 = vadd.f32 %v148, %v209
    %vm214 = vcmask 1046528
    %v215 = vsel %vm214, %v212, -inf
    %v216 = vrot.slane %v215, 4
    %v217 = vmax.f32 %v215, %v216
    %v218 = vrot.slane %v217, 2
    %v219 = vmax.f32 %v217, %v218
    %v220 = vrot.slane %v219, 1
    %v221 = vmax.f32 %v219, %v220
    %v222 = vsel %vm214, %v213, -inf
    %v223 = vrot.slane %v222, 4
    %v224 = vmax.f32 %v222, %v223
    %v225 = vrot.slane %v224, 2
    %v226 = vmax.f32 %v224, %v225
    %v227 = vrot.slane %v226, 1
    %v228 = vmax.f32 %v226, %v227
    %v229 = vld [vmem:[#allocation7] sm:$0x1]
    %v231 = vperm.slane %v229, 0
    %v233 = vadd.f32 %v221, %v231
    %v234 = vadd.f32 %v228, %v231
    %v235 = vmax.f32 %v233, 0.0
    %v236 = vmax.f32 %v234, 0.0
    %vm239 = vcmask 1044484
    %v240 = vsel %vm239, %v235, %v235
    %vm241 = vcmask 1046534
    %v242 = vsel %vm241, %v235, %v240
    %v243 = vrot.slane %v236, 7
    %vm244 = vcmask 1041409
    %v245 = vsel %vm244, %v243, %v242
    %vm246 = vcmask 1043459
    %v247 = vsel %vm246, %v243, %v245
    %vm248 = vcmask 1045509
    %v249 = vsel %vm248, %v243, %v247
    %vm250 = vcmask 1047559
    %v251 = vsel %vm250, %v243, %v249
    %253 = vst [vmem:[#allocation8] sm:$0x3] %v251
    %v256 = vrot.slane %v188, 1
    %v257 = vrot.slane %v190, 1
    %v260 = vadd.f32 %v174, %v256
    %v261 = vadd.f32 %v176, %v257
    %v264 = vrot.slane %v202, 2
    %v265 = vrot.slane %v204, 2
    %v268 = vadd.f32 %v260, %v264
    %v269 = vadd.f32 %v261, %v265
    %vm270 = vcmask 1045504
    %v271 = vsel %vm270, %v268, -inf
    %v272 = vrot.slane %v271, 4
    %v273 = vmax.f32 %v271, %v272
    %v274 = vrot.slane %v273, 2
    %v275 = vmax.f32 %v273, %v274
    %v276 = vrot.slane %v275, 1
    %v277 = vmax.f32 %v275, %v276
    %v278 = vsel %vm270, %v269, -inf
    %v279 = vrot.slane %v278, 4
    %v280 = vmax.f32 %v278, %v279
    %v281 = vrot.slane %v280, 2
    %v282 = vmax.f32 %v280, %v281
    %v283 = vrot.slane %v282, 1
    %v284 = vmax.f32 %v282, %v283
    %v285 = vld [vmem:[#allocation7 + $0x1] sm:$0x1]
    %v287 = vperm.slane %v285, 0
    %v289 = vadd.f32 %v277, %v287
    %v290 = vadd.f32 %v284, %v287
    %v291 = vmax.f32 %v289, 0.0
    %v292 = vmax.f32 %v290, 0.0
    %v295 = vsel %vm239, %v291, %v291
    %v296 = vsel %vm241, %v291, %v295
    %v297 = vrot.slane %v292, 7
    %v298 = vsel %vm244, %v297, %v296
    %v299 = vsel %vm246, %v297, %v298
    %v300 = vsel %vm248, %v297, %v299
    %v301 = vsel %vm250, %v297, %v300
    %303 = vst [vmem:[#allocation8 + $0x2] sm:$0x3] %v301
    // Predicated region
    $region26: #{tpu_custom_call.1} parent=1 // pred_check
      _
    $region27: #{tpu_custom_call.1} parent=1 // pred_check_branch
      %305 = sbr.rel (0) target = $region29
    $region28: #{tpu_custom_call.1} parent=1 // pred_region
      %307 = vsyncadd [#allocation4], 0
      %s309 = sshll.u32 [#allocation8], 4
      %s310 = int_to_ptr.vmem [resolvable:$true] %s309
      %s311 = sshll.u32 %s3, 4
      %s312 = int_to_ptr.hbm [resolvable:$true] %s311
      %314 = dma.vmem_to_hbm [thread:$0]  %s310, 64, %s312, [#allocation4]
    $region29: #{tpu_custom_call.1} parent=1 // pred_fallthru
      _
    // Predicated region
    $region30: #{tpu_custom_call.1} parent=1 // pred_check
      _
    $region31: #{tpu_custom_call.1} parent=1 // pred_check_branch
      %316 = sbr.rel (0) target = $region33
    $region32: #{tpu_custom_call.1} parent=1 // pred_region
      %318 = dma.done [#allocation4], 64
    $region33: #{tpu_custom_call.1} parent=1 // pred_fallthru
      _
    %319 = vsyncpa [#allocation3], 1
    %320 = vsyncpa [#allocation6], 1
    %321 = vsyncpa [#allocation4], 1

</llo_original>
